<compile_context>
chip_gen: v6e
topology: v6e:2x2x1
jax: 0.10.0
libtpu: 0.0.40
codegen_flags: <defaults>
</compile_context>

<pallas_src>
import jax
import jax.numpy as jnp
from jax.experimental import pallas as pl
from jax.experimental.pallas import tpu as pltpu


# ---------------------------------------------------------------------------
# Kernels
# ---------------------------------------------------------------------------
def _bn_kernel_row(x_ref, p_ref, o_ref):
    # x_ref: (Rblk, Lblk) activations.  p_ref: (Rblk, 2) per-row [scale, shift].
    x = x_ref[...].astype(jnp.float32)
    scale = p_ref[:, 0:1]          # (Rblk, 1) -> broadcast over lanes
    shift = p_ref[:, 1:2]
    o_ref[...] = (x * scale + shift).astype(o_ref.dtype)


def _bn_kernel_col(x_ref, p_ref, o_ref):
    # x_ref: (Rblk, Lblk) activations.  p_ref: (2, Lblk) [scale; shift] per lane.
    x = x_ref[...].astype(jnp.float32)
    scale = p_ref[0:1, :]          # (1, Lblk) -> broadcast over sublanes
    shift = p_ref[1:2, :]
    o_ref[...] = (x * scale + shift).astype(o_ref.dtype)


# ---------------------------------------------------------------------------
# Tiling helpers
# ---------------------------------------------------------------------------
def _ceil_div(a, b):
    return -(-a // b)


def _sublane_pack(itemsize):
    # Sub-32-bit dtypes pack along sublanes.
    return {4: 8, 2: 16, 1: 32}.get(itemsize, 8)


def _vmem_budget():
    """(target_block_bytes, vmem_limit_bytes) keyed on the chip's VMEM size."""
    vmem_cap = 64 * 1024 * 1024
    try:
        info = pltpu.get_tpu_info()
        vmem_cap = int(getattr(info, "vmem_capacity_bytes", vmem_cap)) or vmem_cap
    except Exception:
        pass
    if vmem_cap > 96 * 1024 * 1024:
        # v5e / v6e: 128 MiB physical VMEM per TensorCore.
        return 12 * 1024 * 1024, 64 * 1024 * 1024
    # v7x: 64 MiB physical VMEM per TensorCore -> stay well under it
    # (double-buffered input + output ~= 4x block).
    return 8 * 1024 * 1024, 48 * 1024 * 1024


def _choose_blocks(R, L, itemsize, target_bytes, pack):
    """Pick (rblk, lblk) honoring the (8,128) constraint, <= target_bytes.

    Full-L contiguous blocks are preferred; L is only split (into 128-lane
    multiples, ragged edge blocks allowed) when even a minimal row-group of
    full rows would exceed the budget.
    """
    min_rows = min(R, pack)
    if L <= 128 or L * itemsize * min_rows <= target_bytes:
        lblk = L                               # full last dim: always legal
    else:
        lblk = (target_bytes // (itemsize * min_rows) // 128) * 128
        lblk = max(128, min(lblk, L))          # 128-multiple; need not divide L

    row_bytes = lblk * itemsize
    max_rows = max(1, target_bytes // row_bytes)
    if max_rows >= R:
        rblk = R                               # full second-last dim: legal
    else:
        rblk = max(pack, (max_rows // pack) * pack)   # multiple of sublane pack
        rblk = min(rblk, R)
    return rblk, lblk


def _maybe_split_for_megacore(R, L, rblk, lblk, itemsize, pack):
    """Ensure >= 2 grid blocks (both v7x TensorCores busy) for big tensors."""
    n_blocks = _ceil_div(R, rblk) * _ceil_div(L, lblk)
    if n_blocks >= 2 or R * L * itemsize < 4 * 1024 * 1024:
        return rblk, lblk
    if R >= 2 * pack:
        half = _ceil_div(_ceil_div(R, 2), pack) * pack
        if half < R:
            return half, lblk
    if L % 128 == 0 and L >= 256:
        half = _ceil_div(_ceil_div(L, 2), 128) * 128
        if half < L:
            return rblk, half
    return rblk, lblk


# ---------------------------------------------------------------------------
# Public wrapper
# ---------------------------------------------------------------------------
def fixed_batch_norm(x, running_mean, running_var, weight, bias):
    """x: (N, C, H, W). Per-channel params: (C,). Returns same shape/dtype."""
    N, C, H, W = x.shape
    HW = H * W

    # Fold normalization into a per-channel affine (tiny (C,)-sized f32 op).
    inv_std = jax.lax.rsqrt(running_var.astype(jnp.float32) + jnp.float32(1e-5))
    scale = weight.astype(jnp.float32) * inv_std
    shift = bias.astype(jnp.float32) - running_mean.astype(jnp.float32) * scale

    itemsize = jnp.dtype(x.dtype).itemsize
    pack = _sublane_pack(itemsize)
    target_bytes, vmem_limit = _vmem_budget()

    if HW % 128 == 0 or (C * HW) % 128 != 0:
        # Mode A: rows = N*C, lanes = H*W; params are per-row.
        R, L = N * C, HW
        x2 = x.reshape(R, L)                                   # view-only
        params = jnp.stack([jnp.tile(scale, N), jnp.tile(shift, N)], axis=-1)
        kernel = _bn_kernel_row
        p_block_shape = lambda rblk, lblk: (rblk, 2)
        p_index_map = lambda i, j: (i, 0)
    else:
        # Mode B: rows = N, lanes = C*H*W (128-aligned); params are per-lane.
        R, L = N, C * HW
        x2 = x.reshape(R, L)                                   # view-only
        params = jnp.stack([jnp.repeat(scale, HW), jnp.repeat(shift, HW)], axis=0)
        kernel = _bn_kernel_col
        p_block_shape = lambda rblk, lblk: (2, lblk)
        p_index_map = lambda i, j: (0, j)

    rblk, lblk = _choose_blocks(R, L, itemsize, target_bytes, pack)
    rblk, lblk = _maybe_split_for_megacore(R, L, rblk, lblk, itemsize, pack)
    grid = (pl.cdiv(R, rblk), pl.cdiv(L, lblk))

    x_spec = pl.BlockSpec((rblk, lblk), lambda i, j: (i, j))
    p_spec = pl.BlockSpec(p_block_shape(rblk, lblk), p_index_map)

    out2 = pl.pallas_call(
        kernel,
        out_shape=jax.ShapeDtypeStruct((R, L), x.dtype),
        grid=grid,
        in_specs=[x_spec, p_spec],
        out_specs=x_spec,
        compiler_params=pltpu.CompilerParams(
            dimension_semantics=("parallel", "parallel"),
            vmem_limit_bytes=vmem_limit,
        ),
    )(x2, params)

    return out2.reshape(N, C, H, W)


# ---------------------------------------------------------------------------
if __name__ == "__main__":
    key = jax.random.PRNGKey(0)
    k_x, k_m, k_v, k_w, k_b = jax.random.split(key, 5)

    N, C, H, W = 2, 4, 16, 16
    x = jax.random.normal(k_x, (N, C, H, W), dtype=jnp.float32)
    running_mean = jax.random.normal(k_m, (C,), dtype=jnp.float32)
    running_var = jax.random.uniform(
        k_v, (C,), dtype=jnp.float32, minval=0.5, maxval=2.0
    )
    weight = jax.random.normal(k_w, (C,), dtype=jnp.float32)
    bias = jax.random.normal(k_b, (C,), dtype=jnp.float32)

    y = fixed_batch_norm(x, running_mean, running_var, weight, bias)
    y = jax.block_until_ready(y)

    # Pure-JAX reference (mirrors the PyTorch broadcasting exactly).
    ref = (x - running_mean[:, None, None]) / jnp.sqrt(
        running_var[:, None, None] + 1e-5
    ) * weight[:, None, None] + bias[:, None, None]

    assert y.shape == x.shape and y.dtype == x.dtype
    assert jnp.allclose(y, ref, atol=1e-5, rtol=1e-5)
    print("KERNEL_OK")
</pallas_src>

<mosaic_0001>
module attributes {stable_mosaic.version = 11 : i64} {
  func.func @_bn_kernel_row(%arg0: i32, %arg1: i32, %arg2: memref<8x256xf32, #tpu.memory_space<vmem>>, %arg3: memref<8x2xf32, #tpu.memory_space<vmem>>, %arg4: memref<8x256xf32, #tpu.memory_space<vmem>>) attributes {dimension_semantics = [#tpu.dimension_semantics<parallel>, #tpu.dimension_semantics<parallel>], iteration_bounds = array<i64: 1, 1>, scalar_prefetch = 0 : i64, scratch_operands = 0 : i64, tpu.core_type = #tpu.core_type<tc>, window_params = [{transform_indices = @transform_0, window_bounds = array<i64: 8, 256>}, {transform_indices = @transform_1, window_bounds = array<i64: 8, 2>}, {transform_indices = @transform_2, window_bounds = array<i64: 8, 256>}]} {
    %c0 = arith.constant 0 : index
    %c0_0 = arith.constant 0 : index
    %0 = vector.load %arg2[%c0, %c0_0] : memref<8x256xf32, #tpu.memory_space<vmem>>, vector<8x256xf32>
    %c0_1 = arith.constant 0 : index
    %c0_2 = arith.constant 0 : index
    %1 = vector.load %arg3[%c0_1, %c0_2] : memref<8x2xf32, #tpu.memory_space<vmem>>, vector<8x1xf32>
    %c0_3 = arith.constant 0 : index
    %c1 = arith.constant 1 : index
    %2 = vector.load %arg3[%c0_3, %c1] : memref<8x2xf32, #tpu.memory_space<vmem>>, vector<8x1xf32>
    %3 = vector.broadcast %1 : vector<8x1xf32> to vector<8x256xf32>
    %4 = arith.mulf %0, %3 : vector<8x256xf32>
    %5 = vector.broadcast %2 : vector<8x1xf32> to vector<8x256xf32>
    %6 = arith.addf %4, %5 : vector<8x256xf32>
    %c0_4 = arith.constant 0 : index
    %c0_5 = arith.constant 0 : index
    %7 = vector.load %arg4[%c0_4, %c0_5] : memref<8x256xf32, #tpu.memory_space<vmem>>, vector<8x256xf32>
    tpu.vector_store %arg4[%c0_4, %c0_5], %6 {strides = array<i32>} : memref<8x256xf32, #tpu.memory_space<vmem>>, vector<8x256xf32>,
    return
  }
  func.func @transform_0(%arg0: i32, %arg1: i32) -> (i32, i32) {
    %c0_i32 = arith.constant 0 : i32
    return %arg0, %arg1 : i32, i32
  }
  func.func @transform_1(%arg0: i32, %arg1: i32) -> (i32, i32) {
    %c0_i32 = arith.constant 0 : i32
    %c0_i32_0 = arith.constant 0 : i32
    return %arg0, %c0_i32 : i32, i32
  }
  func.func @transform_2(%arg0: i32, %arg1: i32) -> (i32, i32) {
    %c0_i32 = arith.constant 0 : i32
    return %arg0, %arg1 : i32, i32
  }
}

</mosaic_0001>

<llo_original>
// kernel: tpu_custom_call.1
$region0: #{tpu_custom_call.1}
  #allocation0 [shape = 'u32[]', space=smem, size = 0x4, offset = 0x4, fixed_abs, tag = 'smem constant byte address 0x4 - core index']
  #allocation1 [shape = 'u32[144,128]{1,0:T(1,128)}', space=vmem, size = 0x12000, scoped, tag = 'internal scratch']
  %s0 = inlined_call_operand.hbm [shape: f32[8,256], index: 0, kind: input, shape index: {}]
  %s1 = inlined_call_operand.vmem [shape: f32[8,2], index: 1, kind: input, shape index: {}]
  %s2 = inlined_call_operand.hbm [shape: f32[8,256], index: 2, kind: output, shape index: {}]
  %s3 = sld [smem:[#allocation0]]
  $region22: #{tpu_custom_call.1} parent=0
    _
  %s5 = ssub.s32 1, %s3
  %s6 = scalar_select 0, %s5, %s3
  $region1: #{tpu_custom_call.1} parent=0
    #allocation2 [shape = 'u8[8192]{0}', space=vmem, size = 0x2000, scoped, tag = 'input window, operand 0, single buffered']
    #allocation3 [shape = 's32[1]{0}', space=sflag, size = 0x4, scoped, tag = 'scoped memory for tpu_custom_call.1']
    #allocation4 [shape = 's32[1]{0}', space=sflag, size = 0x4, scoped, tag = 'scoped memory for tpu_custom_call.1']
    #allocation5 [shape = 'u8[8192]{0}', space=vmem, size = 0x2000, scoped, tag = 'output window, operand 0, single buffered']
    %7 = vsyncpa [#allocation3], 0
    %8 = vsyncpa [#allocation4], 0
    // Predicated region
    $region2: #{tpu_custom_call.1} parent=1 // pred_check
      _
    $region3: #{tpu_custom_call.1} parent=1 // pred_check_branch
      %10 = sbr.rel (0) target = $region5
    $region4: #{tpu_custom_call.1} parent=1 // pred_region
      %s12 = ssub.s32 256, 256
      %13 = vsyncadd [#allocation3], %s12
      %s15 = sshll.u32 [#allocation2], 4
      %s16 = int_to_ptr.vmem [resolvable:$true] %s15
      %18 = dma.hbm_to_vmem [thread:$0]  %s0, 256, %s16, [#allocation3]
    $region5: #{tpu_custom_call.1} parent=1 // pred_fallthru
      _
    // Predicated region
    $region6: #{tpu_custom_call.1} parent=1 // pred_check
      _
    $region7: #{tpu_custom_call.1} parent=1 // pred_check_branch
      %20 = sbr.rel (0) target = $region9
    $region8: #{tpu_custom_call.1} parent=1 // pred_region
      _
    $region9: #{tpu_custom_call.1} parent=1 // pred_fallthru
      _
    // Predicated region
    $region10: #{tpu_custom_call.1} parent=1 // pred_check
      _
    $region11: #{tpu_custom_call.1} parent=1 // pred_check_branch
      %22 = sbr.rel (0) target = $region13
    $region12: #{tpu_custom_call.1} parent=1 // pred_region
      %23 = dma.done [#allocation3], 256
    $region13: #{tpu_custom_call.1} parent=1 // pred_fallthru
      _
    %v24 = vld [vmem:[#allocation2] sm:$0xff]
    %v25 = vld [vmem:[#allocation2 + $0x8] sm:$0xff]
    %v26 = vld [vmem:[%s1] sm:$0xff]
    %28 = vset.pattern.permute.xlu0 0
    %29 = vperm.xlu0 %28, %v26
    %v30 = vpop.permute.xlu0 %29
    %v32 = vmul.f32 %v24, %v30
    %v33 = vmul.f32 %v25, %v30
    %34 = vset.pattern.permute.xlu0 1
    %35 = vperm.xlu0 %34, %v26
    %v36 = vpop.permute.xlu0 %35
    %v38 = vadd.f32 %v32, %v36
    %v39 = vadd.f32 %v33, %v36
    %40 = vst [vmem:[#allocation5] sm:$0xff] %v38
    %41 = vst [vmem:[#allocation5 + $0x8] sm:$0xff] %v39
    // Predicated region
    $region14: #{tpu_custom_call.1} parent=1 // pred_check
      _
    $region15: #{tpu_custom_call.1} parent=1 // pred_check_branch
      %43 = sbr.rel (0) target = $region17
    $region16: #{tpu_custom_call.1} parent=1 // pred_region
      %s45 = ssub.s32 256, 256
      %46 = vsyncadd [#allocation4], %s45
      %s48 = sshll.u32 [#allocation5], 4
      %s49 = int_to_ptr.vmem [resolvable:$true] %s48
      %51 = dma.vmem_to_hbm [thread:$0]  %s49, 256, %s2, [#allocation4]
    $region17: #{tpu_custom_call.1} parent=1 // pred_fallthru
      _
    // Predicated region
    $region18: #{tpu_custom_call.1} parent=1 // pred_check
      _
    $region19: #{tpu_custom_call.1} parent=1 // pred_check_branch
      %53 = sbr.rel (0) target = $region21
    $region20: #{tpu_custom_call.1} parent=1 // pred_region
      %54 = dma.done [#allocation4], 256
    $region21: #{tpu_custom_call.1} parent=1 // pred_fallthru
      _
    %55 = vsyncpa [#allocation3], 1
    %56 = vsyncpa [#allocation4], 1

</llo_original>
